<compile_context>
chip_gen: v6e
topology: v6e:2x2x1
jax: 0.10.0
libtpu: 0.0.40
codegen_flags: <defaults>
</compile_context>

<pallas_src>
import functools
import math

import jax
import jax.numpy as jnp
from jax import lax
from jax.experimental import pallas as pl
from jax.experimental.pallas import tpu as pltpu


def _round_up(x, m):
    return ((x + m - 1) // m) * m


def prepare_decoder_head_weight(weight):
    """One-time (init-side) weight preparation.

    weight: [num_classes, embedding_dim] (PyTorch nn.Linear layout).
    Returns [embedding_dim, C_pad] with C_pad = round_up(num_classes, 128), so
    the kernel can contract K on sublanes and keep classes lane-dense.
    Call once at parameter setup, NOT per forward.
    """
    C, D = weight.shape
    C_pad = _round_up(C, 128)
    if C_pad != C:
        weight = jnp.pad(weight, ((0, C_pad - C), (0, 0)))
    return jnp.transpose(weight)  # [D, C_pad]


def _head_kernel(bias_ref, x_ref, w_ref, o_ref, *, mxu_dtype):
    # bias_ref: SMEM (1,) scalar learned bias
    # x_ref:    (TM, D) VMEM activation tile
    # w_ref:    (D, TN) VMEM weight tile (already transposed, classes on lanes)
    # o_ref:    (TM, TN) VMEM output tile
    x = x_ref[...]
    w = w_ref[...]
    if mxu_dtype is not None:
        x = x.astype(mxu_dtype)
        w = w.astype(mxu_dtype)
    acc = lax.dot_general(
        x, w,
        dimension_numbers=(((1,), (0,)), ((), ())),   # x @ W_t, K on sublanes
        preferred_element_type=jnp.float32,
    )
    o_ref[...] = (acc + bias_ref[0]).astype(o_ref.dtype)


def massformer_decoder_head(input_nodes, weight_t, bias, num_classes,
                            *, tm=512, tn=256, mxu_dtype=None):
    """Forward pass.

    input_nodes: [B, N, D]
    weight_t:    [D, C_pad] from prepare_decoder_head_weight (done once at init)
    bias:        [1] scalar learned bias
    num_classes: logical number of classes C (<= C_pad)
    mxu_dtype:   e.g. jnp.bfloat16 to feed the MXU bf16 on v6e/v7x (f32 acc).
    """
    B, N, D = input_nodes.shape
    D_w, C_pad = weight_t.shape
    assert D_w == D and C_pad % 128 == 0
    C = num_classes
    M = B * N

    x_bytes = jnp.dtype(input_nodes.dtype).itemsize
    w_bytes = jnp.dtype(weight_t.dtype).itemsize
    o_bytes = x_bytes

    # M tile: multiple of 8 (f32 sublane); ragged last tile handled by Pallas.
    TM = min(tm, _round_up(M, 8))
    grid_m = pl.cdiv(M, TM)

    x2d = input_nodes.reshape(M, D)
    kernel = functools.partial(_head_kernel, mxu_dtype=mxu_dtype)

    weight_total_bytes = D * C_pad * w_bytes
    resident = weight_total_bytes <= (8 << 20)

    if resident:
        # 1-D grid over M; full weight resident in VMEM (constant block index ->
        # fetched once, never re-streamed); full-width lane-dense output tile.
        TN = C_pad
        grid = (grid_m,)
        in_specs = [
            pl.BlockSpec(memory_space=pltpu.MemorySpace.SMEM),     # scalar bias
            pl.BlockSpec((TM, D), lambda i: (i, 0)),               # activations
            pl.BlockSpec((D, C_pad), lambda i: (0, 0)),            # resident W
        ]
        out_specs = pl.BlockSpec((TM, C_pad), lambda i: (i, 0))
        dims = ("parallel",)
    else:
        # Large head: tile classes too. TN a multiple of 128 that divides C_pad
        # (C_pad is a 128 multiple, so gcd keeps it lane-dense).
        TN = math.gcd(_round_up(min(tn, C_pad), 128), C_pad)
        grid = (grid_m, C_pad // TN)
        in_specs = [
            pl.BlockSpec(memory_space=pltpu.MemorySpace.SMEM),
            pl.BlockSpec((TM, D), lambda i, j: (i, 0)),
            pl.BlockSpec((D, TN), lambda i, j: (0, j)),
        ]
        out_specs = pl.BlockSpec((TM, TN), lambda i, j: (i, j))
        dims = ("parallel", "parallel")

    # VMEM budget: double-buffered x / out tiles + (worst case) double weight.
    vmem_need = 2 * TM * D * x_bytes + 2 * TM * TN * o_bytes + 2 * D * TN * w_bytes
    compiler_kwargs = dict(dimension_semantics=dims)
    if vmem_need > (12 << 20):
        # Only raise the scoped limit when the defaults (16 MiB on v5e) are
        # tight; cap well under v7x's 64 MiB physical VMEM.
        compiler_kwargs["vmem_limit_bytes"] = min(int(vmem_need * 1.5), 48 << 20)

    cost = pl.CostEstimate(
        flops=2 * M * C_pad * D,
        transcendentals=0,
        bytes_accessed=(M * D * x_bytes
                        + D * C_pad * w_bytes * (1 if resident else grid_m)
                        + M * C_pad * o_bytes),
    )

    out2d = pl.pallas_call(
        kernel,
        out_shape=jax.ShapeDtypeStruct((M, C_pad), input_nodes.dtype),
        grid_spec=pltpu.PrefetchScalarGridSpec(
            num_scalar_prefetch=0,
            grid=grid,
            in_specs=in_specs,
            out_specs=out_specs,
        ),
        compiler_params=pltpu.CompilerParams(**compiler_kwargs),
        cost_estimate=cost,
    )(bias, x2d, weight_t)

    return out2d[:, :C].reshape(B, N, C)


def reference(input_nodes, weight, bias):
    return jnp.einsum("bnd,cd->bnc", input_nodes, weight) + bias[0]


if __name__ == "__main__":
    key = jax.random.PRNGKey(0)
    B, N, D, C = 2, 8, 32, 16  # batch, nodes, embedding_dim, num_classes

    k_x, k_w = jax.random.split(key)
    input_nodes = jax.random.normal(k_x, (B, N, D), dtype=jnp.float32)
    # nn.Linear weight layout: [num_classes, embedding_dim].
    weight = jax.random.normal(k_w, (C, D), dtype=jnp.float32) * 0.05
    bias = jnp.zeros((1,), dtype=jnp.float32) + 0.123  # lm_output_learned_bias

    # One-time init-side prep (padding + transpose hoisted out of forward).
    weight_t = prepare_decoder_head_weight(weight)

    out = massformer_decoder_head(input_nodes, weight_t, bias, C)
    jax.block_until_ready(out)
    ref = reference(input_nodes, weight, bias)
    assert out.shape == (B, N, C)
    assert jnp.allclose(out, ref, atol=1e-5, rtol=1e-5), "mismatch vs reference"

    # Re-verify the ragged-M boundary tile (M not a multiple of the sublane 8).
    B2, N2 = 3, 5
    x2 = jax.random.normal(jax.random.PRNGKey(1), (B2, N2, D), dtype=jnp.float32)
    out2 = massformer_decoder_head(x2, weight_t, bias, C)
    jax.block_until_ready(out2)
    ref2 = reference(x2, weight, bias)
    assert out2.shape == (B2, N2, C)
    assert jnp.allclose(out2, ref2, atol=1e-5, rtol=1e-5), "ragged-edge mismatch"

    print("KERNEL_OK")
</pallas_src>

<mosaic_0001>
module attributes {stable_mosaic.version = 11 : i64} {
  func.func @_head_kernel(%arg0: i32, %arg1: memref<1xf32, #tpu.memory_space<smem>>, %arg2: memref<16x32xf32, #tpu.memory_space<vmem>>, %arg3: memref<32x128xf32, #tpu.memory_space<vmem>>, %arg4: memref<16x128xf32, #tpu.memory_space<vmem>>) attributes {dimension_semantics = [#tpu.dimension_semantics<parallel>], iteration_bounds = array<i64: 1>, scalar_prefetch = 0 : i64, scratch_operands = 0 : i64, tpu.core_type = #tpu.core_type<tc>, window_params = [{transform_indices = @transform_0, window_bounds = array<i64: 1>}, {transform_indices = @transform_1, window_bounds = array<i64: 16, 32>}, {pipeline_mode = #tpu.pipeline_mode<synchronous>, transform_indices = @transform_2, window_bounds = array<i64: 32, 128>}, {transform_indices = @transform_3, window_bounds = array<i64: 16, 128>}]} {
    %c0 = arith.constant 0 : index
    %c0_0 = arith.constant 0 : index
    %0 = vector.load %arg2[%c0, %c0_0] : memref<16x32xf32, #tpu.memory_space<vmem>>, vector<16x32xf32>
    %c0_1 = arith.constant 0 : index
    %c0_2 = arith.constant 0 : index
    %1 = vector.load %arg3[%c0_1, %c0_2] : memref<32x128xf32, #tpu.memory_space<vmem>>, vector<32x128xf32>
    %cst = arith.constant dense<0.000000e+00> : vector<16x128xf32>
    %2 = tpu.matmul %0, %1, %cst {dimension_numbers = #tpu.dot_dimension_numbers<[1], [0], [0], [1], [0, 0, 1, 1], [], []>} : vector<16x32xf32>, vector<32x128xf32>, vector<16x128xf32> -> vector<16x128xf32>
    %c0_3 = arith.constant 0 : index
    %3 = memref.load %arg1[%c0_3] : memref<1xf32, #tpu.memory_space<smem>>
    %4 = vector.broadcast %3 : f32 to vector<16x128xf32>
    %5 = arith.addf %2, %4 : vector<16x128xf32>
    %c0_4 = arith.constant 0 : index
    %c0_5 = arith.constant 0 : index
    %6 = vector.load %arg4[%c0_4, %c0_5] : memref<16x128xf32, #tpu.memory_space<vmem>>, vector<16x128xf32>
    tpu.vector_store %arg4[%c0_4, %c0_5], %5 {strides = array<i32>} : memref<16x128xf32, #tpu.memory_space<vmem>>, vector<16x128xf32>,
    return
  }
  func.func @transform_0(%arg0: i32) -> i32 {
    %c0_i32 = arith.constant 0 : i32
    %c0_i32_0 = arith.constant 0 : i32
    return %c0_i32 : i32
  }
  func.func @transform_1(%arg0: i32) -> (i32, i32) {
    %c0_i32 = arith.constant 0 : i32
    %c0_i32_0 = arith.constant 0 : i32
    return %arg0, %c0_i32 : i32, i32
  }
  func.func @transform_2(%arg0: i32) -> (i32, i32) {
    %c0_i32 = arith.constant 0 : i32
    %c0_i32_0 = arith.constant 0 : i32
    %c0_i32_1 = arith.constant 0 : i32
    return %c0_i32, %c0_i32_0 : i32, i32
  }
  func.func @transform_3(%arg0: i32) -> (i32, i32) {
    %c0_i32 = arith.constant 0 : i32
    %c0_i32_0 = arith.constant 0 : i32
    return %arg0, %c0_i32 : i32, i32
  }
}

</mosaic_0001>

<llo_original>
// kernel: tpu_custom_call.1
$region0: #{tpu_custom_call.1}
  #allocation0 [shape = 'u32[]', space=smem, size = 0x4, offset = 0x4, fixed_abs, tag = 'smem constant byte address 0x4 - core index']
  #allocation1 [shape = 'u32[144,128]{1,0:T(1,128)}', space=vmem, size = 0x12000, scoped, tag = 'internal scratch']
  #allocation2 [shape = 'f32[1]{0:T(128)S(6)}', space=smem, size = 0x200, scoped, tag = 'scoped memory for tpu_custom_call.1']
  %s0 = inlined_call_operand.<no memory space> [shape: f32[1], index: 0, kind: input, shape index: {}]
  %s1 = inlined_call_operand.hbm [shape: f32[16,32], index: 1, kind: input, shape index: {}]
  %s2 = inlined_call_operand.hbm [shape: f32[32,128], index: 2, kind: input, shape index: {}]
  %s3 = inlined_call_operand.hbm [shape: f32[16,128], index: 3, kind: output, shape index: {}]
  %s4 = sld [smem:[#allocation0]]
  $region30: #{tpu_custom_call.1} parent=0
    _
  %s6 = ssub.s32 1, %s4
  %s7 = scalar_select 0, %s6, %s4
  %8 = sst [smem:[#allocation2]] %s0
  $region1: #{tpu_custom_call.1} parent=0
    #allocation3 [shape = 'u8[8192]{0}', space=vmem, size = 0x2000, scoped, tag = 'input window, operand 1, single buffered']
    #allocation4 [shape = 's32[1]{0}', space=sflag, size = 0x4, scoped, tag = 'scoped memory for tpu_custom_call.1']
    #allocation5 [shape = 's32[1]{0}', space=sflag, size = 0x4, scoped, tag = 'scoped memory for tpu_custom_call.1']
    #allocation6 [shape = 'u8[16384]{0}', space=vmem, size = 0x4000, scoped, tag = 'input window, operand 2, single buffered']
    #allocation7 [shape = 's32[1]{0}', space=sflag, size = 0x4, scoped, tag = 'scoped memory for tpu_custom_call.1']
    #allocation8 [shape = 'u8[8192]{0}', space=vmem, size = 0x2000, scoped, tag = 'output window, operand 0, single buffered']
    %9 = vsyncpa [#allocation4], 0
    %10 = vsyncpa [#allocation7], 0
    %11 = vsyncpa [#allocation5], 0
    // Predicated region
    $region2: #{tpu_custom_call.1} parent=1 // pred_check
      _
    $region3: #{tpu_custom_call.1} parent=1 // pred_check_branch
      %13 = sbr.rel (0) target = $region5
    $region4: #{tpu_custom_call.1} parent=1 // pred_region
      _
    $region5: #{tpu_custom_call.1} parent=1 // pred_fallthru
      _
    // Predicated region
    $region6: #{tpu_custom_call.1} parent=1 // pred_check
      _
    $region7: #{tpu_custom_call.1} parent=1 // pred_check_branch
      %15 = sbr.rel (0) target = $region9
    $region8: #{tpu_custom_call.1} parent=1 // pred_region
      %s17 = ssub.s32 256, 256
      %18 = vsyncadd [#allocation4], %s17
      %s19 = sshll.u32 [#allocation3], 4
      %s20 = int_to_ptr.vmem [resolvable:$true] %s19
      %25 = dma.hbm_to_vmem [thread:$0]  %s1, 256, %s20, [#allocation4], 128, 128, 8
    $region9: #{tpu_custom_call.1} parent=1 // pred_fallthru
      _
    // Predicated region
    $region10: #{tpu_custom_call.1} parent=1 // pred_check
      _
    $region11: #{tpu_custom_call.1} parent=1 // pred_check_branch
      %27 = sbr.rel (0) target = $region13
    $region12: #{tpu_custom_call.1} parent=1 // pred_region
      %s29 = ssub.s32 512, 512
      %30 = vsyncadd [#allocation7], %s29
      %s31 = sshll.u32 [#allocation6], 4
      %s32 = int_to_ptr.vmem [resolvable:$true] %s31
      %37 = dma.hbm_to_vmem [thread:$0]  %s2, 512, %s32, [#allocation7], 128, 128, 8
    $region13: #{tpu_custom_call.1} parent=1 // pred_fallthru
      _
    // Predicated region
    $region14: #{tpu_custom_call.1} parent=1 // pred_check
      _
    $region15: #{tpu_custom_call.1} parent=1 // pred_check_branch
      %39 = sbr.rel (0) target = $region17
    $region16: #{tpu_custom_call.1} parent=1 // pred_region
      %40 = dma.done [#allocation4], 256
    $region17: #{tpu_custom_call.1} parent=1 // pred_fallthru
      _
    // Predicated region
    $region18: #{tpu_custom_call.1} parent=1 // pred_check
      _
    $region19: #{tpu_custom_call.1} parent=1 // pred_check_branch
      %42 = sbr.rel (0) target = $region21
    $region20: #{tpu_custom_call.1} parent=1 // pred_region
      %43 = dma.done [#allocation7], 512
    $region21: #{tpu_custom_call.1} parent=1 // pred_fallthru
      _
    %v44 = vld [vmem:[#allocation3] sm:$0xff]
    %v45 = vld [vmem:[#allocation3 + $0x8] sm:$0xff]
    %v46 = vld [vmem:[#allocation6] sm:$0xff]
    %v47 = vld [vmem:[#allocation6 + $0x8] sm:$0xff]
    %v48 = vld [vmem:[#allocation6 + $0x10] sm:$0xff]
    %v49 = vld [vmem:[#allocation6 + $0x18] sm:$0xff]
    %s50 = sld [smem:[#allocation2]]
    %v51 = vstv %s50
    %vm52 = vcmask 261120
    %v54 = vsel %vm52, %v44, 0
    %v57 = vsel %vm52, %v45, 0
    %59 = vmatprep.subr.mxu0 0.0
    %60 = vmatpush1.msra.mxu0 0.0
    %61 = vmatprep.subr.mxu0 0.0
    %62 = vmatpush1.msra.mxu0 0.0
    %63 = vmatprep.subr.mxu0 0.0
    %64 = vmatpush1.msra.mxu0 0.0
    %65 = vmatprep.subr.mxu0 0.0
    %66 = vmatpush1.msra.mxu0 0.0
    %67 = vmatprep.subr.mxu0 0.0
    %68 = vmatpush1.msra.mxu0 0.0
    %69 = vmatprep.subr.mxu0 0.0
    %70 = vmatpush1.msra.mxu0 0.0
    %71 = vmatprep.subr.mxu0 0.0
    %72 = vmatpush1.msra.mxu0 0.0
    %73 = vmatprep.subr.mxu0 0.0
    %74 = vmatpush1.msra.mxu0 0.0
    %75 = vmatprep.subr.mxu0 0.0
    %76 = vmatpush1.msra.mxu0 0.0
    %77 = vmatprep.subr.mxu0 0.0
    %78 = vmatpush1.msra.mxu0 0.0
    %79 = vmatprep.subr.mxu0 0.0
    %80 = vmatpush1.msra.mxu0 0.0
    %81 = vmatprep.subr.mxu0 0.0
    %82 = vmatpush1.msra.mxu0 0.0
    %83 = vmatprep.subr.mxu0 0.0
    %84 = vmatpush1.msra.mxu0 %v49
    %85 = vmatprep.subr.mxu0 0.0
    %86 = vmatpush1.msra.mxu0 %v48
    %87 = vmatprep.subr.mxu0 0.0
    %88 = vmatpush1.msra.mxu0 %v47
    %89 = vmatprep.subr.mxu0 0.0
    %90 = vmatpush1.msra.mxu0 %v46
    %91 = vmatprep.subr.mxu0 0.0
    %92 = vmatpush2.msra.mxu0 0.0
    %93 = vmatprep.subr.mxu0 0.0
    %94 = vmatpush2.msra.mxu0 0.0
    %95 = vmatprep.subr.mxu0 0.0
    %96 = vmatpush2.msra.mxu0 0.0
    %97 = vmatprep.subr.mxu0 0.0
    %98 = vmatpush2.msra.mxu0 0.0
    %99 = vmatprep.subr.mxu0 0.0
    %100 = vmatpush2.msra.mxu0 0.0
    %101 = vmatprep.subr.mxu0 0.0
    %102 = vmatpush2.msra.mxu0 0.0
    %103 = vmatprep.subr.mxu0 0.0
    %104 = vmatpush2.msra.mxu0 0.0
    %105 = vmatprep.subr.mxu0 0.0
    %106 = vmatpush2.msra.mxu0 0.0
    %107 = vmatprep.subr.mxu0 0.0
    %108 = vmatpush2.msra.mxu0 0.0
    %109 = vmatprep.subr.mxu0 0.0
    %110 = vmatpush2.msra.mxu0 0.0
    %111 = vmatprep.subr.mxu0 0.0
    %112 = vmatpush2.msra.mxu0 0.0
    %113 = vmatprep.subr.mxu0 0.0
    %114 = vmatpush2.msra.mxu0 0.0
    %115 = vmatprep.subr.mxu0 0.0
    %116 = vmatpush2.msra.mxu0 0.0
    %117 = vmatprep.subr.mxu0 0.0
    %118 = vmatpush2.msra.mxu0 0.0
    %119 = vmatprep.subr.mxu0 0.0
    %120 = vmatpush2.msra.mxu0 0.0
    %121 = vmatprep.subr.mxu0 0.0
    %122 = vmatpush2.msra.mxu0 0.0
    %123 = vmatprep.mubr.f32.mxu0 0.0
    %124 = vmatmul.mubr.f32.gmra.mxu0 %v54
    %v125 = vpop.f32.mrf.mxu0
    %v126 = vadd.f32 %v51, %v125
    %v127 = vpop.f32.mrf.mxu0
    %128 = vmatprep.mubr.f32.mxu0 0.0
    %129 = vmatmul.mubr.f32.gmra.mxu0 %v57
    %v130 = vpop.f32.mrf.mxu0
    %v131 = vadd.f32 %v51, %v130
    %v132 = vpop.f32.mrf.mxu0
    %133 = vdwg.mxu0
    %134 = vst [vmem:[#allocation8] sm:$0xff] %v126
    %135 = vst [vmem:[#allocation8 + $0x8] sm:$0xff] %v131
    // Predicated region
    $region22: #{tpu_custom_call.1} parent=1 // pred_check
      _
    $region23: #{tpu_custom_call.1} parent=1 // pred_check_branch
      %137 = sbr.rel (0) target = $region25
    $region24: #{tpu_custom_call.1} parent=1 // pred_region
      %s139 = ssub.s32 256, 256
      %140 = vsyncadd [#allocation5], %s139
      %s141 = sshll.u32 [#allocation8], 4
      %s142 = int_to_ptr.vmem [resolvable:$true] %s141
      %147 = dma.vmem_to_hbm [thread:$0]  %s142, 256, %s3, [#allocation5], 128, 128, 8
    $region25: #{tpu_custom_call.1} parent=1 // pred_fallthru
      _
    // Predicated region
    $region26: #{tpu_custom_call.1} parent=1 // pred_check
      _
    $region27: #{tpu_custom_call.1} parent=1 // pred_check_branch
      %149 = sbr.rel (0) target = $region29
    $region28: #{tpu_custom_call.1} parent=1 // pred_region
      %150 = dma.done [#allocation5], 256
    $region29: #{tpu_custom_call.1} parent=1 // pred_fallthru
      _
    %151 = vsyncpa [#allocation4], 1
    %152 = vsyncpa [#allocation7], 1
    %153 = vsyncpa [#allocation5], 1

</llo_original>
